<compile_context>
chip_gen: v5e
topology: v5e:2x2
jax: 0.10.0
libtpu: 0.0.40
codegen_flags: <defaults>
</compile_context>

<pallas_src>
import functools
import math

import jax
import jax.numpy as jnp
from jax.experimental import pallas as pl
from jax.experimental.pallas import tpu as pltpu


def _ceil_div(a, b):
    return -(-a // b)


# --------------------------------------------------------------------------
# Kernels
# --------------------------------------------------------------------------
def _rows_kernel(x1_ref, x2_ref, *out_refs, H, W_valid, total_rows,
                 mask_lr, with_grads, check_rows):
    """Block = B whole images stacked as (B*H, Wc) rows (lane axis = width)."""
    if with_grads:
        g1_ref, g2_ref, part_ref = out_refs
    else:
        (part_ref,) = out_refs

    rows, Wc = x1_ref.shape
    x1 = x1_ref[...].astype(jnp.float32)
    x2 = x2_ref[...].astype(jnp.float32)

    # Reduced-shape boundary masks, built once and shared by both Laplacians.
    r = jax.lax.broadcasted_iota(jnp.int32, (rows, 1), 0)
    rin = r % H                      # row index within each image (block = whole imgs)
    not_top = rin != 0
    not_bot = rin != (H - 1)
    if mask_lr:
        c = jax.lax.broadcasted_iota(jnp.int32, (1, Wc), 1)
        not_left = c != 0
        not_right = c != (Wc - 1)

    def lap(x):
        up = jnp.where(not_top, pltpu.roll(x, 1, 0), 0.0)            # x[i-1, j]
        down = jnp.where(not_bot, pltpu.roll(x, rows - 1, 0), 0.0)   # x[i+1, j]
        left = pltpu.roll(x, 1, 1)                                   # x[i, j-1]
        right = pltpu.roll(x, Wc - 1, 1)                             # x[i, j+1]
        if mask_lr:
            # Needed only when there is no zero-padded column to wrap in.
            left = jnp.where(not_left, left, 0.0)
            right = jnp.where(not_right, right, 0.0)
        return 4.0 * x - up - down - left - right

    g1 = lap(x1)
    g2 = lap(x2)
    if with_grads:
        g1_ref[...] = g1.astype(g1_ref.dtype)
        g2_ref[...] = g2.astype(g2_ref.dtype)

    d = g1 - g2
    d2 = d * d
    if W_valid < Wc:                 # exclude zero-padded columns from the loss
        c2 = jax.lax.broadcasted_iota(jnp.int32, (1, Wc), 1)
        d2 = jnp.where(c2 < W_valid, d2, 0.0)
    if check_rows:                   # exclude garbage rows of a clipped last block
        grow = pl.program_id(0) * rows + r
        d2 = jnp.where(grow < total_rows, d2, 0.0)

    # Sublane-axis reduction (mostly VPU); final fold done in the wrapper.
    part = jnp.sum(d2, axis=0, keepdims=True)
    part_ref[...] = part.reshape(part_ref.shape)


def _flat_kernel(x1_ref, x2_ref, *out_refs, W, total_imgs, with_grads,
                 check_rows):
    """Block = B whole images, each flattened onto the lane axis: (B, H*W)."""
    if with_grads:
        g1_ref, g2_ref, part_ref = out_refs
    else:
        (part_ref,) = out_refs

    B, L = x1_ref.shape
    x1 = x1_ref[...].astype(jnp.float32)
    x2 = x2_ref[...].astype(jnp.float32)

    f = jax.lax.broadcasted_iota(jnp.int32, (1, L), 1)   # flat pixel index
    cw = f % W
    not_top = f >= W
    not_bot = f < (L - W)
    not_left = cw != 0
    not_right = cw != (W - 1)

    def lap(x):
        up = jnp.where(not_top, pltpu.roll(x, W, 1), 0.0)        # x[i-1, j]
        down = jnp.where(not_bot, pltpu.roll(x, L - W, 1), 0.0)  # x[i+1, j]
        left = jnp.where(not_left, pltpu.roll(x, 1, 1), 0.0)     # x[i, j-1]
        right = jnp.where(not_right, pltpu.roll(x, L - 1, 1), 0.0)
        return 4.0 * x - up - down - left - right

    g1 = lap(x1)
    g2 = lap(x2)
    if with_grads:
        g1_ref[...] = g1.astype(g1_ref.dtype)
        g2_ref[...] = g2.astype(g2_ref.dtype)

    d = g1 - g2
    d2 = d * d
    if check_rows:                   # garbage images in a clipped last block
        r = jax.lax.broadcasted_iota(jnp.int32, (B, 1), 0)
        d2 = jnp.where(pl.program_id(0) * B + r < total_imgs, d2, 0.0)

    part = jnp.sum(d2, axis=0, keepdims=True)
    part_ref[...] = part.reshape(part_ref.shape)


# --------------------------------------------------------------------------
# Wrapper
# --------------------------------------------------------------------------
def _vmem_budget():
    """Generation-aware VMEM sizing (v5e/v6e: 128 MiB, v7x: 64 MiB)."""
    try:
        cap = int(pltpu.get_tpu_info().vmem_capacity_bytes)
    except Exception:
        cap = 64 * 1024 * 1024                     # conservative (v7x per-core)
    block_budget = int(cap * 0.35)                 # pipeline buffers + temps
    vmem_limit = int(min(cap * 0.70, 112 * 1024 * 1024))
    return block_budget, vmem_limit


def edge_loss_laplace(out, target, *, return_grads=True, images_per_block=None):
    """Equivalent of EdgeLossLaplace.forward(out, target).

    Args:
      out, target: arrays of shape (N, 1, H, W) (NCHW), float32 or bfloat16.
      return_grads: if False, only the scalar loss is computed (no g1/g2 HBM
        writes - the loss-only fast path).
      images_per_block: optional override of the images-per-grid-step choice.
    Returns:
      (loss, g1, g2) with g1/g2 in the input dtype, or just loss.
    """
    N, C, H, W = out.shape
    assert C == 1, "Laplacian filter has a single input channel"
    assert target.shape == out.shape

    io_dtype = out.dtype
    L = H * W

    # ---- layout selection (avoid any wrapper-side padding when possible) ----
    if W % 128 == 0:
        layout = "rows"            # (N*H, W): lane-dense as-is, free reshape
        Wc = W
    elif L % 128 == 0:
        layout = "flat"            # (N, H*W): whole image on the lane axis
        Wc = L
    else:
        layout = "rows_pad"        # fallback: pad the width to a lane multiple
        Wc = max(128, _ceil_div(W, 128) * 128)
        # TODO(synk): fuse this pad into the kernel (W-wide in/out blocks) once
        # non-128-multiple lane rolls are validated on all generations.

    rows_per_img = 1 if layout == "flat" else H
    elems_per_img = Wc if layout == "flat" else H * Wc

    # ---- block sizing ----
    block_budget, vmem_limit = _vmem_budget()
    io_bytes = jnp.dtype(io_dtype).itemsize
    # double-buffered pipeline I/O (+g1/g2 if requested) + f32 in-kernel temps
    per_elem = (8 if return_grads else 4) * io_bytes + 8 * 4
    B_cap = max(1, block_budget // (per_elem * elems_per_img))
    unit = 8 // math.gcd(rows_per_img, 8)          # images per 8-row sublane tile

    if images_per_block is not None:
        B = min(max(1, int(images_per_block)), N)
        if B < N:
            B = min(_ceil_div(B, unit) * unit, N)
    elif B_cap >= N:
        if N >= 2 * unit:
            # Keep >=2 grid steps so the "parallel" axis can use both
            # TensorCores on v7x.
            B = _ceil_div(_ceil_div(N, 2), unit) * unit
        else:
            B = N                                   # single full block
    else:
        B = max(unit, (B_cap // unit) * unit)
        # TODO(synk): intra-image row tiling (halo rows) for frames too large
        # to fit one image per VMEM block.
    B = min(B, N)
    G = _ceil_div(N, B)
    partial = (B * G) != N          # last block clipped (garbage rows masked)

    blk_rows = B * rows_per_img
    total_rows = N * rows_per_img

    # ---- build 2-D views (free reshapes; pad only in the fallback layout) ----
    if layout == "flat":
        x1 = out.reshape(N, L)
        x2 = target.reshape(N, L)
        kernel = functools.partial(_flat_kernel, W=W, total_imgs=N,
                                   with_grads=return_grads, check_rows=partial)
    else:
        x1 = out.reshape(N * H, W)
        x2 = target.reshape(N * H, W)
        if layout == "rows_pad":
            x1 = jnp.pad(x1, ((0, 0), (0, Wc - W)))
            x2 = jnp.pad(x2, ((0, 0), (0, Wc - W)))
        kernel = functools.partial(
            _rows_kernel, H=H, W_valid=W, total_rows=total_rows,
            mask_lr=(layout == "rows"), with_grads=return_grads,
            check_rows=partial)

    img_spec = pl.BlockSpec((blk_rows, Wc), lambda i: (i, 0))
    part_spec = pl.BlockSpec((1, 1, Wc), lambda i: (i, 0, 0))
    part_shape = jax.ShapeDtypeStruct((G, 1, Wc), jnp.float32)

    if return_grads:
        out_shape = (jax.ShapeDtypeStruct((total_rows, Wc), io_dtype),
                     jax.ShapeDtypeStruct((total_rows, Wc), io_dtype),
                     part_shape)
        out_specs = (img_spec, img_spec, part_spec)
    else:
        out_shape = (part_shape,)
        out_specs = (part_spec,)

    results = pl.pallas_call(
        kernel,
        out_shape=out_shape,
        grid_spec=pltpu.PrefetchScalarGridSpec(
            num_scalar_prefetch=0,
            grid=(G,),
            in_specs=[img_spec, img_spec],
            out_specs=out_specs,
        ),
        compiler_params=pltpu.CompilerParams(
            # Every step writes disjoint output blocks -> safe to shard across
            # TensorCores (2x on v7x, neutral on v5e/v6e).
            dimension_semantics=("parallel",),
            vmem_limit_bytes=vmem_limit,
        ),
    )(x1, x2)

    parts = results[-1]
    loss = jnp.sum(parts) * jnp.float32(1.0 / (N * C * H * W))
    if not return_grads:
        return loss

    g1p, g2p = results[0], results[1]
    if layout == "rows_pad":
        g1 = g1p.reshape(N, H, Wc)[:, :, :W].reshape(N, C, H, W)
        g2 = g2p.reshape(N, H, Wc)[:, :, :W].reshape(N, C, H, W)
    else:
        g1 = g1p.reshape(N, C, H, W)
        g2 = g2p.reshape(N, C, H, W)
    return loss, g1, g2


# --------------------------------------------------------------------------
# Pure-JAX reference (zero-padded 3x3 Laplacian conv) for sanity checking.
# --------------------------------------------------------------------------
def _reference(out, target):
    def lap(x):
        xp = jnp.pad(x, ((0, 0), (0, 0), (1, 1), (1, 1)))
        return (4.0 * x
                - xp[:, :, 0:-2, 1:-1]   # up neighbor
                - xp[:, :, 2:, 1:-1]     # down neighbor
                - xp[:, :, 1:-1, 0:-2]   # left neighbor
                - xp[:, :, 1:-1, 2:])    # right neighbor
    g1 = lap(out)
    g2 = lap(target)
    return jnp.mean((g1 - g2) ** 2), g1, g2


if __name__ == "__main__":
    key = jax.random.PRNGKey(0)
    k1, k2 = jax.random.split(key)

    # Primary example (module-consistent small shapes): (N, C, H, W)
    N, C, H, W = 2, 1, 16, 16
    out_img = jax.random.normal(k1, (N, C, H, W), dtype=jnp.float32)
    tgt_img = jax.random.normal(k2, (N, C, H, W), dtype=jnp.float32)

    loss, g1, g2 = edge_loss_laplace(out_img, tgt_img)
    jax.block_until_ready((loss, g1, g2))

    loss_r, g1_r, g2_r = _reference(out_img, tgt_img)
    assert jnp.allclose(g1, g1_r, atol=1e-5, rtol=1e-5)
    assert jnp.allclose(g2, g2_r, atol=1e-5, rtol=1e-5)
    assert jnp.allclose(loss, loss_r, atol=1e-5, rtol=1e-5)

    # Loss-only fast path (skips the g1/g2 HBM writes).
    loss_only = edge_loss_laplace(out_img, tgt_img, return_grads=False)
    jax.block_until_ready(loss_only)
    assert jnp.allclose(loss_only, loss_r, atol=1e-5, rtol=1e-5)

    # Lane-aligned (W % 128 == 0) layout, multiple grid steps, clipped last block.
    N2, H2, W2 = 6, 8, 128
    a = jax.random.normal(k1, (N2, 1, H2, W2), dtype=jnp.float32)
    b = jax.random.normal(k2, (N2, 1, H2, W2), dtype=jnp.float32)
    l2, g1b, g2b = edge_loss_laplace(a, b, images_per_block=4)
    jax.block_until_ready((l2, g1b, g2b))
    l2_r, g1b_r, g2b_r = _reference(a, b)
    assert jnp.allclose(g1b, g1b_r, atol=1e-5, rtol=1e-5)
    assert jnp.allclose(g2b, g2b_r, atol=1e-5, rtol=1e-5)
    assert jnp.allclose(l2, l2_r, atol=1e-4, rtol=1e-5)

    # Irregular-width fallback (padded layout, pad column supplies zero neighbors).
    N3, H3, W3 = 2, 8, 24
    c = jax.random.normal(k1, (N3, 1, H3, W3), dtype=jnp.float32)
    d = jax.random.normal(k2, (N3, 1, H3, W3), dtype=jnp.float32)
    l3, g1c, g2c = edge_loss_laplace(c, d)
    jax.block_until_ready((l3, g1c, g2c))
    l3_r, g1c_r, g2c_r = _reference(c, d)
    assert jnp.allclose(g1c, g1c_r, atol=1e-5, rtol=1e-5)
    assert jnp.allclose(g2c, g2c_r, atol=1e-5, rtol=1e-5)
    assert jnp.allclose(l3, l3_r, atol=1e-5, rtol=1e-5)

    print("KERNEL_OK")
</pallas_src>

<mosaic_0001>
module attributes {stable_mosaic.version = 11 : i64} {
  func.func @_flat_kernel(%arg0: i32, %arg1: memref<2x256xf32, #tpu.memory_space<vmem>>, %arg2: memref<2x256xf32, #tpu.memory_space<vmem>>, %arg3: memref<2x256xf32, #tpu.memory_space<vmem>>, %arg4: memref<2x256xf32, #tpu.memory_space<vmem>>, %arg5: memref<1x1x256xf32, #tpu.memory_space<vmem>>) attributes {dimension_semantics = [#tpu.dimension_semantics<parallel>], iteration_bounds = array<i64: 1>, scalar_prefetch = 0 : i64, scratch_operands = 0 : i64, tpu.core_type = #tpu.core_type<tc>, window_params = [{transform_indices = @transform_0, window_bounds = array<i64: 2, 256>}, {transform_indices = @transform_1, window_bounds = array<i64: 2, 256>}, {transform_indices = @transform_2, window_bounds = array<i64: 2, 256>}, {transform_indices = @transform_3, window_bounds = array<i64: 2, 256>}, {transform_indices = @transform_4, window_bounds = array<i64: 1, 1, 256>}]} {
    %c0 = arith.constant 0 : index
    %c0_0 = arith.constant 0 : index
    %0 = vector.load %arg1[%c0, %c0_0] : memref<2x256xf32, #tpu.memory_space<vmem>>, vector<2x256xf32>
    %c0_1 = arith.constant 0 : index
    %c0_2 = arith.constant 0 : index
    %1 = vector.load %arg2[%c0_1, %c0_2] : memref<2x256xf32, #tpu.memory_space<vmem>>, vector<2x256xf32>
    %2 = tpu.iota {dimensions = array<i32: 1>} : vector<1x256xi32>
    %c16_i32 = arith.constant 16 : i32
    %c0_i32 = arith.constant 0 : i32
    %3 = arith.cmpi eq, %c16_i32, %c0_i32 : i32
    %c1_i32 = arith.constant 1 : i32
    %4 = arith.select %3, %c1_i32, %c16_i32 : i32
    %5 = vector.broadcast %4 : i32 to vector<1x256xi32>
    %6 = arith.remsi %2, %5 : vector<1x256xi32>
    %c0_i32_3 = arith.constant 0 : i32
    %7 = vector.broadcast %c0_i32_3 : i32 to vector<1x256xi32>
    %8 = arith.cmpi ne, %6, %7 : vector<1x256xi32>
    %c0_i32_4 = arith.constant 0 : i32
    %9 = vector.broadcast %c0_i32_4 : i32 to vector<1x256xi32>
    %10 = arith.cmpi slt, %6, %9 : vector<1x256xi32>
    %c0_i32_5 = arith.constant 0 : i32
    %11 = arith.cmpi slt, %4, %c0_i32_5 : i32
    %12 = vector.broadcast %11 : i1 to vector<1x256xi1>
    %13 = vector.broadcast %12 : vector<1x256xi1> to vector<1x256xi1>
    %14 = arith.xori %10, %13 : vector<1x256xi1>
    %15 = arith.andi %14, %8 : vector<1x256xi1>
    %16 = vector.broadcast %4 : i32 to vector<1x256xi32>
    %17 = arith.addi %6, %16 : vector<1x256xi32>
    %18 = arith.select %15, %17, %6 : vector<1x256xi1>, vector<1x256xi32>
    %c16_i32_6 = arith.constant 16 : i32
    %19 = vector.broadcast %c16_i32_6 : i32 to vector<1x256xi32>
    %20 = arith.cmpi sge, %2, %19 : vector<1x256xi32>
    %c240_i32 = arith.constant 240 : i32
    %21 = vector.broadcast %c240_i32 : i32 to vector<1x256xi32>
    %22 = arith.cmpi slt, %2, %21 : vector<1x256xi32>
    %c0_i32_7 = arith.constant 0 : i32
    %23 = vector.broadcast %c0_i32_7 : i32 to vector<1x256xi32>
    %24 = arith.cmpi ne, %18, %23 : vector<1x256xi32>
    %c15_i32 = arith.constant 15 : i32
    %25 = vector.broadcast %c15_i32 : i32 to vector<1x256xi32>
    %26 = arith.cmpi ne, %18, %25 : vector<1x256xi32>
    %c16_i32_8 = arith.constant 16 : i32
    %27 = tpu.dynamic_rotate %0 by %c16_i32_8 dim 1 : vector<2x256xf32>, i32 -> vector<2x256xf32>
    %cst = arith.constant 0.000000e+00 : f32
    %28 = vector.shape_cast %20 : vector<1x256xi1> to vector<1x256xi1>
    %29 = vector.broadcast %28 : vector<1x256xi1> to vector<2x256xi1>
    %30 = vector.broadcast %cst : f32 to vector<2x256xf32>
    %31 = arith.select %29, %27, %30 : vector<2x256xi1>, vector<2x256xf32>
    %c240_i32_9 = arith.constant 240 : i32
    %32 = tpu.dynamic_rotate %0 by %c240_i32_9 dim 1 : vector<2x256xf32>, i32 -> vector<2x256xf32>
    %cst_10 = arith.constant 0.000000e+00 : f32
    %33 = vector.shape_cast %22 : vector<1x256xi1> to vector<1x256xi1>
    %34 = vector.broadcast %33 : vector<1x256xi1> to vector<2x256xi1>
    %35 = vector.broadcast %cst_10 : f32 to vector<2x256xf32>
    %36 = arith.select %34, %32, %35 : vector<2x256xi1>, vector<2x256xf32>
    %c1_i32_11 = arith.constant 1 : i32
    %37 = tpu.dynamic_rotate %0 by %c1_i32_11 dim 1 : vector<2x256xf32>, i32 -> vector<2x256xf32>
    %cst_12 = arith.constant 0.000000e+00 : f32
    %38 = vector.shape_cast %24 : vector<1x256xi1> to vector<1x256xi1>
    %39 = vector.broadcast %38 : vector<1x256xi1> to vector<2x256xi1>
    %40 = vector.broadcast %cst_12 : f32 to vector<2x256xf32>
    %41 = arith.select %39, %37, %40 : vector<2x256xi1>, vector<2x256xf32>
    %c255_i32 = arith.constant 255 : i32
    %42 = tpu.dynamic_rotate %0 by %c255_i32 dim 1 : vector<2x256xf32>, i32 -> vector<2x256xf32>
    %cst_13 = arith.constant 0.000000e+00 : f32
    %43 = vector.shape_cast %26 : vector<1x256xi1> to vector<1x256xi1>
    %44 = vector.broadcast %43 : vector<1x256xi1> to vector<2x256xi1>
    %45 = vector.broadcast %cst_13 : f32 to vector<2x256xf32>
    %46 = arith.select %44, %42, %45 : vector<2x256xi1>, vector<2x256xf32>
    %cst_14 = arith.constant 4.000000e+00 : f32
    %47 = vector.broadcast %cst_14 : f32 to vector<2x256xf32>
    %48 = arith.mulf %47, %0 : vector<2x256xf32>
    %49 = arith.subf %48, %31 : vector<2x256xf32>
    %50 = arith.subf %49, %36 : vector<2x256xf32>
    %51 = arith.subf %50, %41 : vector<2x256xf32>
    %52 = arith.subf %51, %46 : vector<2x256xf32>
    %c16_i32_15 = arith.constant 16 : i32
    %53 = tpu.dynamic_rotate %1 by %c16_i32_15 dim 1 : vector<2x256xf32>, i32 -> vector<2x256xf32>
    %cst_16 = arith.constant 0.000000e+00 : f32
    %54 = vector.shape_cast %20 : vector<1x256xi1> to vector<1x256xi1>
    %55 = vector.broadcast %54 : vector<1x256xi1> to vector<2x256xi1>
    %56 = vector.broadcast %cst_16 : f32 to vector<2x256xf32>
    %57 = arith.select %55, %53, %56 : vector<2x256xi1>, vector<2x256xf32>
    %c240_i32_17 = arith.constant 240 : i32
    %58 = tpu.dynamic_rotate %1 by %c240_i32_17 dim 1 : vector<2x256xf32>, i32 -> vector<2x256xf32>
    %cst_18 = arith.constant 0.000000e+00 : f32
    %59 = vector.shape_cast %22 : vector<1x256xi1> to vector<1x256xi1>
    %60 = vector.broadcast %59 : vector<1x256xi1> to vector<2x256xi1>
    %61 = vector.broadcast %cst_18 : f32 to vector<2x256xf32>
    %62 = arith.select %60, %58, %61 : vector<2x256xi1>, vector<2x256xf32>
    %c1_i32_19 = arith.constant 1 : i32
    %63 = tpu.dynamic_rotate %1 by %c1_i32_19 dim 1 : vector<2x256xf32>, i32 -> vector<2x256xf32>
    %cst_20 = arith.constant 0.000000e+00 : f32
    %64 = vector.shape_cast %24 : vector<1x256xi1> to vector<1x256xi1>
    %65 = vector.broadcast %64 : vector<1x256xi1> to vector<2x256xi1>
    %66 = vector.broadcast %cst_20 : f32 to vector<2x256xf32>
    %67 = arith.select %65, %63, %66 : vector<2x256xi1>, vector<2x256xf32>
    %c255_i32_21 = arith.constant 255 : i32
    %68 = tpu.dynamic_rotate %1 by %c255_i32_21 dim 1 : vector<2x256xf32>, i32 -> vector<2x256xf32>
    %cst_22 = arith.constant 0.000000e+00 : f32
    %69 = vector.shape_cast %26 : vector<1x256xi1> to vector<1x256xi1>
    %70 = vector.broadcast %69 : vector<1x256xi1> to vector<2x256xi1>
    %71 = vector.broadcast %cst_22 : f32 to vector<2x256xf32>
    %72 = arith.select %70, %68, %71 : vector<2x256xi1>, vector<2x256xf32>
    %cst_23 = arith.constant 4.000000e+00 : f32
    %73 = vector.broadcast %cst_23 : f32 to vector<2x256xf32>
    %74 = arith.mulf %73, %1 : vector<2x256xf32>
    %75 = arith.subf %74, %57 : vector<2x256xf32>
    %76 = arith.subf %75, %62 : vector<2x256xf32>
    %77 = arith.subf %76, %67 : vector<2x256xf32>
    %78 = arith.subf %77, %72 : vector<2x256xf32>
    %c0_24 = arith.constant 0 : index
    %c0_25 = arith.constant 0 : index
    %79 = vector.load %arg3[%c0_24, %c0_25] : memref<2x256xf32, #tpu.memory_space<vmem>>, vector<2x256xf32>
    tpu.vector_store %arg3[%c0_24, %c0_25], %52 {strides = array<i32>} : memref<2x256xf32, #tpu.memory_space<vmem>>, vector<2x256xf32>,
    %c0_26 = arith.constant 0 : index
    %c0_27 = arith.constant 0 : index
    %80 = vector.load %arg4[%c0_26, %c0_27] : memref<2x256xf32, #tpu.memory_space<vmem>>, vector<2x256xf32>
    tpu.vector_store %arg4[%c0_26, %c0_27], %78 {strides = array<i32>} : memref<2x256xf32, #tpu.memory_space<vmem>>, vector<2x256xf32>,
    %81 = arith.subf %52, %78 : vector<2x256xf32>
    %82 = arith.mulf %81, %81 : vector<2x256xf32>
    %cst_28 = arith.constant dense<0.000000e+00> : vector<256xf32>
    %83 = vector.multi_reduction <add>, %82, %cst_28 [0] : vector<2x256xf32> to vector<256xf32>
    %84 = vector.shape_cast %83 : vector<256xf32> to vector<1x256xf32>
    %85 = vector.shape_cast %84 : vector<1x256xf32> to vector<1x1x256xf32>
    %c0_29 = arith.constant 0 : index
    %c0_30 = arith.constant 0 : index
    %c0_31 = arith.constant 0 : index
    %86 = vector.load %arg5[%c0_29, %c0_30, %c0_31] : memref<1x1x256xf32, #tpu.memory_space<vmem>>, vector<1x1x256xf32>
    tpu.vector_store %arg5[%c0_29, %c0_30, %c0_31], %85 {strides = array<i32>} : memref<1x1x256xf32, #tpu.memory_space<vmem>>, vector<1x1x256xf32>,
    return
  }
  func.func @transform_0(%arg0: i32) -> (i32, i32) {
    %c0_i32 = arith.constant 0 : i32
    %c0_i32_0 = arith.constant 0 : i32
    return %arg0, %c0_i32 : i32, i32
  }
  func.func @transform_1(%arg0: i32) -> (i32, i32) {
    %c0_i32 = arith.constant 0 : i32
    %c0_i32_0 = arith.constant 0 : i32
    return %arg0, %c0_i32 : i32, i32
  }
  func.func @transform_2(%arg0: i32) -> (i32, i32) {
    %c0_i32 = arith.constant 0 : i32
    %c0_i32_0 = arith.constant 0 : i32
    return %arg0, %c0_i32 : i32, i32
  }
  func.func @transform_3(%arg0: i32) -> (i32, i32) {
    %c0_i32 = arith.constant 0 : i32
    %c0_i32_0 = arith.constant 0 : i32
    return %arg0, %c0_i32 : i32, i32
  }
  func.func @transform_4(%arg0: i32) -> (i32, i32, i32) {
    %c0_i32 = arith.constant 0 : i32
    %c0_i32_0 = arith.constant 0 : i32
    %c0_i32_1 = arith.constant 0 : i32
    return %arg0, %c0_i32, %c0_i32_0 : i32, i32, i32
  }
}

</mosaic_0001>

<llo_original>
// kernel: tpu_custom_call.1
$region0: #{tpu_custom_call.1}
  #allocation0 [shape = 'u32[]', space=smem, size = 0x4, offset = 0x4, fixed_abs, tag = 'smem constant byte address 0x4 - core index']
  #allocation1 [shape = 'u32[72,128]{1,0:T(1,128)}', space=vmem, size = 0x9000, scoped, tag = 'internal scratch']
  %s0 = inlined_call_operand.hbm [shape: f32[2,256], index: 0, kind: input, shape index: {}]
  %s1 = inlined_call_operand.hbm [shape: f32[2,256], index: 1, kind: input, shape index: {}]
  %s2 = inlined_call_operand.hbm [shape: f32[2,256], index: 2, kind: output, shape index: {0}]
  %s3 = inlined_call_operand.hbm [shape: f32[2,256], index: 3, kind: output, shape index: {1}]
  %s4 = inlined_call_operand.hbm [shape: f32[1,1,256], index: 4, kind: output, shape index: {2}]
  %5 = xla_tuple %s2, %s3, %s4
  %s6 = sld [smem:[#allocation0]]
  $region42: #{tpu_custom_call.1} parent=0
    _
  %s8 = ssub.s32 1, %s6
  %s9 = scalar_select 0, %s8, %s6
  $region1: #{tpu_custom_call.1} parent=0
    #allocation2 [shape = 'u8[2048]{0}', space=vmem, size = 0x800, scoped, tag = 'input window, operand 0, single buffered']
    #allocation3 [shape = 's32[1]{0}', space=sflag, size = 0x4, scoped, tag = 'scoped memory for tpu_custom_call.1']
    #allocation4 [shape = 's32[1]{0}', space=sflag, size = 0x4, scoped, tag = 'scoped memory for tpu_custom_call.1']
    #allocation5 [shape = 'u8[2048]{0}', space=vmem, size = 0x800, scoped, tag = 'input window, operand 1, single buffered']
    #allocation6 [shape = 's32[1]{0}', space=sflag, size = 0x4, scoped, tag = 'scoped memory for tpu_custom_call.1']
    #allocation7 [shape = 'u8[2048]{0}', space=vmem, size = 0x800, scoped, tag = 'output window, operand 0, single buffered']
    #allocation8 [shape = 'u8[2048]{0}', space=vmem, size = 0x800, scoped, tag = 'output window, operand 1, single buffered']
    #allocation9 [shape = 's32[1]{0}', space=sflag, size = 0x4, scoped, tag = 'scoped memory for tpu_custom_call.1']
    #allocation10 [shape = 'u8[1024]{0}', space=vmem, size = 0x400, scoped, tag = 'output window, operand 2, single buffered']
    %10 = vsyncpa [#allocation3], 0
    %11 = vsyncpa [#allocation6], 0
    %12 = vsyncpa [#allocation4], 0
    %13 = vsyncpa [#allocation9], 0
    // Predicated region
    $region2: #{tpu_custom_call.1} parent=1 // pred_check
      _
    $region3: #{tpu_custom_call.1} parent=1 // pred_check_branch
      %15 = sbr.rel (0) target = $region5
    $region4: #{tpu_custom_call.1} parent=1 // pred_region
      %17 = vsyncadd [#allocation3], 0
      %s19 = sshll.u32 %s0, 4
      %s20 = int_to_ptr.hbm [resolvable:$true] %s19
      %s21 = sshll.u32 [#allocation2], 4
      %s22 = int_to_ptr.vmem [resolvable:$true] %s21
      %24 = dma.hbm_to_vmem [thread:$0]  %s20, 64, %s22, [#allocation3]
    $region5: #{tpu_custom_call.1} parent=1 // pred_fallthru
      _
    // Predicated region
    $region6: #{tpu_custom_call.1} parent=1 // pred_check
      _
    $region7: #{tpu_custom_call.1} parent=1 // pred_check_branch
      %26 = sbr.rel (0) target = $region9
    $region8: #{tpu_custom_call.1} parent=1 // pred_region
      %28 = vsyncadd [#allocation6], 0
      %s30 = sshll.u32 %s1, 4
      %s31 = int_to_ptr.hbm [resolvable:$true] %s30
      %s32 = sshll.u32 [#allocation5], 4
      %s33 = int_to_ptr.vmem [resolvable:$true] %s32
      %35 = dma.hbm_to_vmem [thread:$0]  %s31, 64, %s33, [#allocation6]
    $region9: #{tpu_custom_call.1} parent=1 // pred_fallthru
      _
    // Predicated region
    $region10: #{tpu_custom_call.1} parent=1 // pred_check
      _
    $region11: #{tpu_custom_call.1} parent=1 // pred_check_branch
      %37 = sbr.rel (0) target = $region13
    $region12: #{tpu_custom_call.1} parent=1 // pred_region
      %39 = dma.done [#allocation3], 64
    $region13: #{tpu_custom_call.1} parent=1 // pred_fallthru
      _
    // Predicated region
    $region14: #{tpu_custom_call.1} parent=1 // pred_check
      _
    $region15: #{tpu_custom_call.1} parent=1 // pred_check_branch
      %41 = sbr.rel (0) target = $region17
    $region16: #{tpu_custom_call.1} parent=1 // pred_region
      %43 = dma.done [#allocation6], 64
    $region17: #{tpu_custom_call.1} parent=1 // pred_fallthru
      _
    %v44 = vld [vmem:[#allocation2] sm:$0xf]
    %v45 = vld [vmem:[#allocation5] sm:$0xf]
    %v46 = vlaneseq
    %v47 = vand.u32 %v46, 127
    %v48 = vadd.s32 %v47, 128
    %vm49 = vcmp.lt.s32.totalorder %v47, 0
    %v50 = vsub.s32 0, %v47
    %v51 = vsel %vm49, %v50, %v47
    %v52 = vshrl.u32 %v51, 4
    %v53 = vand.u32 %v51, 15
    %v54 = vsub.s32 0, %v53
    %v55 = vsel %vm49, %v54, %v53
    %vm56 = vcmp.lt.s32.totalorder %v48, 0
    %v57 = vsub.s32 0, %v48
    %v58 = vsel %vm56, %v57, %v48
    %v59 = vshrl.u32 %v58, 4
    %v60 = vand.u32 %v58, 15
    %v61 = vsub.s32 0, %v60
    %v62 = vsel %vm56, %v61, %v60
    %vm63 = vcmp.ne.s32.totalorder %v55, 0
    %vm64 = vcmp.ne.s32.totalorder %v62, 0
    %vm65 = vcmp.lt.s32.totalorder %v55, 0
    %vm66 = vcmp.lt.s32.totalorder %v62, 0
    %vm67 = vmand %vm65, %vm63
    %vm68 = vmand %vm66, %vm64
    %v69 = vadd.s32 %v55, 16
    %v70 = vadd.s32 %v62, 16
    %v71 = vsel %vm67, %v69, %v55
    %v72 = vsel %vm68, %v70, %v62
    %vm73 = vcmp.ge.s32.totalorder %v47, 16
    %vm74 = vcmp.ge.s32.totalorder %v48, 16
    %vm75 = vcmp.lt.s32.totalorder %v47, 240
    %vm76 = vcmp.lt.s32.totalorder %v48, 240
    %vm77 = vcmp.ne.s32.totalorder %v71, 0
    %vm78 = vcmp.ne.s32.totalorder %v72, 0
    %vm79 = vcmp.ne.s32.totalorder %v71, 15
    %vm80 = vcmp.ne.s32.totalorder %v72, 15
    %82 = vst [vmem:[#allocation1] ss:$4 sm:$0xff] %v44
    %v83 = vld.sshfl [vmem:[#allocation1] sm:$0xff pattern:$0x73625140]
    %v84 = vld.sshfl [vmem:[#allocation1 + $0x8] sm:$0xff pattern:$0x73625140]
    %87 = vrot.lane.b32.xlu0 %v83, 16
    %v88 = vpop.permute.xlu0 %87
    %89 = vrot.lane.b32.xlu0 %v84, 16
    %v90 = vpop.permute.xlu0 %89
    %vm91 = vcmp.lt.s32.totalorder %v47, 16
    %v92 = vsel %vm91, %v88, %v90
    %v93 = vsel %vm91, %v90, %v88
    %v94 = vsel %vm73, 1, 0
    %v95 = vsel %vm74, 1, 0
    %vm96 = vcmp.eq.s32.totalorder %v94, 1
    %vm97 = vcmp.eq.s32.totalorder %v95, 1
    %v98 = vsel %vm96, %v93, 0.0
    %v99 = vsel %vm97, %v92, 0.0
    %100 = vst [vmem:[#allocation1] ss:$4 sm:$0xff] %v44
    %v101 = vld.sshfl [vmem:[#allocation1] sm:$0xff pattern:$0x73625140]
    %v102 = vld.sshfl [vmem:[#allocation1 + $0x8] sm:$0xff pattern:$0x73625140]
    %105 = vrot.lane.b32.xlu0 %v101, 112
    %v106 = vpop.permute.xlu0 %105
    %107 = vrot.lane.b32.xlu0 %v102, 112
    %v108 = vpop.permute.xlu0 %107
    %vm109 = vcmp.lt.s32.totalorder %v47, 112
    %v110 = vsel %vm109, %v106, %v108
    %v111 = vsel %vm109, %v108, %v106
    %v112 = vsel %vm75, 1, 0
    %v113 = vsel %vm76, 1, 0
    %vm114 = vcmp.eq.s32.totalorder %v112, 1
    %vm115 = vcmp.eq.s32.totalorder %v113, 1
    %v116 = vsel %vm114, %v110, 0.0
    %v117 = vsel %vm115, %v111, 0.0
    %118 = vst [vmem:[#allocation1] ss:$4 sm:$0xff] %v44
    %v119 = vld.sshfl [vmem:[#allocation1] sm:$0xff pattern:$0x73625140]
    %v120 = vld.sshfl [vmem:[#allocation1 + $0x8] sm:$0xff pattern:$0x73625140]
    %123 = vrot.lane.b32.xlu0 %v119, 1
    %v124 = vpop.permute.xlu0 %123
    %125 = vrot.lane.b32.xlu0 %v120, 1
    %v126 = vpop.permute.xlu0 %125
    %vm127 = vcmp.lt.s32.totalorder %v47, 1
    %v128 = vsel %vm127, %v124, %v126
    %v129 = vsel %vm127, %v126, %v124
    %v130 = vsel %vm77, 1, 0
    %v131 = vsel %vm78, 1, 0
    %vm132 = vcmp.eq.s32.totalorder %v130, 1
    %vm133 = vcmp.eq.s32.totalorder %v131, 1
    %v134 = vsel %vm132, %v129, 0.0
    %v135 = vsel %vm133, %v128, 0.0
    %136 = vst [vmem:[#allocation1] ss:$4 sm:$0xff] %v44
    %v137 = vld.sshfl [vmem:[#allocation1] sm:$0xff pattern:$0x73625140]
    %v138 = vld.sshfl [vmem:[#allocation1 + $0x8] sm:$0xff pattern:$0x73625140]
    %141 = vrot.lane.b32.xlu0 %v137, 127
    %v142 = vpop.permute.xlu0 %141
    %143 = vrot.lane.b32.xlu0 %v138, 127
    %v144 = vpop.permute.xlu0 %143
    %vm145 = vcmp.lt.s32.totalorder %v47, 127
    %v146 = vsel %vm145, %v142, %v144
    %v147 = vsel %vm145, %v144, %v142
    %v148 = vsel %vm79, 1, 0
    %v149 = vsel %vm80, 1, 0
    %vm150 = vcmp.eq.s32.totalorder %v148, 1
    %vm151 = vcmp.eq.s32.totalorder %v149, 1
    %v152 = vsel %vm150, %v146, 0.0
    %v153 = vsel %vm151, %v147, 0.0
    %v154 = vmul.f32 %v44, 4.0
    %v157 = vrot.slane %v99, 6
    %vm158 = vcmask 1041408
    %v159 = vsel %vm158, %v98, %v157
    %v161 = vsub.f32 %v154, %v159
    %v164 = vrot.slane %v117, 6
    %v165 = vsel %vm158, %v116, %v164
    %v167 = vsub.f32 %v161, %v165
    %v170 = vrot.slane %v135, 6
    %v171 = vsel %vm158, %v134, %v170
    %v173 = vsub.f32 %v167, %v171
    %v176 = vrot.slane %v153, 6
    %v177 = vsel %vm158, %v152, %v176
    %v179 = vsub.f32 %v173, %v177
    %181 = vst [vmem:[#allocation1] ss:$4 sm:$0xff] %v45
    %v182 = vld.sshfl [vmem:[#allocation1] sm:$0xff pattern:$0x73625140]
    %v183 = vld.sshfl [vmem:[#allocation1 + $0x8] sm:$0xff pattern:$0x73625140]
    %186 = vrot.lane.b32.xlu0 %v182, 16
    %v187 = vpop.permute.xlu0 %186
    %188 = vrot.lane.b32.xlu0 %v183, 16
    %v189 = vpop.permute.xlu0 %188
    %v190 = vsel %vm91, %v187, %v189
    %v191 = vsel %vm91, %v189, %v187
    %v192 = vsel %vm96, %v191, 0.0
    %v193 = vsel %vm97, %v190, 0.0
    %194 = vst [vmem:[#allocation1] ss:$4 sm:$0xff] %v45
    %v195 = vld.sshfl [vmem:[#allocation1] sm:$0xff pattern:$0x73625140]
    %v196 = vld.sshfl [vmem:[#allocation1 + $0x8] sm:$0xff pattern:$0x73625140]
    %199 = vrot.lane.b32.xlu0 %v195, 112
    %v200 = vpop.permute.xlu0 %199
    %201 = vrot.lane.b32.xlu0 %v196, 112
    %v202 = vpop.permute.xlu0 %201
    %v203 = vsel %vm109, %v200, %v202
    %v204 = vsel %vm109, %v202, %v200
    %v205 = vsel %vm114, %v203, 0.0
    %v206 = vsel %vm115, %v204, 0.0
    %207 = vst [vmem:[#allocation1] ss:$4 sm:$0xff] %v45
    %v208 = vld.sshfl [vmem:[#allocation1] sm:$0xff pattern:$0x73625140]
    %v209 = vld.sshfl [vmem:[#allocation1 + $0x8] sm:$0xff pattern:$0x73625140]
    %212 = vrot.lane.b32.xlu0 %v208, 1
    %v213 = vpop.permute.xlu0 %212
    %214 = vrot.lane.b32.xlu0 %v209, 1
    %v215 = vpop.permute.xlu0 %214
    %v216 = vsel %vm127, %v213, %v215
    %v217 = vsel %vm127, %v215, %v213
    %v218 = vsel %vm132, %v217, 0.0
    %v219 = vsel %vm133, %v216, 0.0
    %220 = vst [vmem:[#allocation1] ss:$4 sm:$0xff] %v45
    %v221 = vld.sshfl [vmem:[#allocation1] sm:$0xff pattern:$0x73625140]
    %v222 = vld.sshfl [vmem:[#allocation1 + $0x8] sm:$0xff pattern:$0x73625140]
    %225 = vrot.lane.b32.xlu0 %v221, 127
    %v226 = vpop.permute.xlu0 %225
    %227 = vrot.lane.b32.xlu0 %v222, 127
    %v228 = vpop.permute.xlu0 %227
    %v229 = vsel %vm145, %v226, %v228
    %v230 = vsel %vm145, %v228, %v226
    %v231 = vsel %vm150, %v229, 0.0
    %v232 = vsel %vm151, %v230, 0.0
    %v233 = vmul.f32 %v45, 4.0
    %v236 = vrot.slane %v193, 6
    %v237 = vsel %vm158, %v192, %v236
    %v239 = vsub.f32 %v233, %v237
    %v242 = vrot.slane %v206, 6
    %v243 = vsel %vm158, %v205, %v242
    %v245 = vsub.f32 %v239, %v243
    %v248 = vrot.slane %v219, 6
    %v249 = vsel %vm158, %v218, %v248
    %v251 = vsub.f32 %v245, %v249
    %v254 = vrot.slane %v232, 6
    %v255 = vsel %vm158, %v231, %v254
    %v257 = vsub.f32 %v251, %v255
    %258 = vst [vmem:[#allocation7] sm:$0xf] %v179
    %259 = vst [vmem:[#allocation8] sm:$0xf] %v257
    %v260 = vsub.f32 %v179, %v257
    %v261 = vmul.f32 %v260, %v260
    %263 = vst [vmem:[#allocation1] ss:$4 sm:$0xff] %v261
    %v264 = vld.sshfl [vmem:[#allocation1] sm:$0xff pattern:$0x73625140]
    %v265 = vld.sshfl [vmem:[#allocation1 + $0x8] sm:$0xff pattern:$0x73625140]
    %v268 = vsel %vm158, %v264, 0.0
    %v269 = vrot.slane %v268, 4
    %v270 = vadd.f32 %v268, %v269
    %v271 = vrot.slane %v270, 2
    %v272 = vadd.f32 %v270, %v271
    %v273 = vrot.slane %v272, 1
    %v274 = vadd.f32 %v272, %v273
    %v275 = vsel %vm158, %v265, 0.0
    %v276 = vrot.slane %v275, 4
    %v277 = vadd.f32 %v275, %v276
    %v278 = vrot.slane %v277, 2
    %v279 = vadd.f32 %v277, %v278
    %v280 = vrot.slane %v279, 1
    %v281 = vadd.f32 %v279, %v280
    %v284 = vrot.slane %v281, 7
    %vm285 = vcmask 1040384
    %v286 = vsel %vm285, %v274, %v284
    %v288 = vlaneseq
    %vm289 = vcmp.ge.s32.totalorder %v288, 0
    %vm290 = vcmp.lt.s32.totalorder %v288, 256
    %vm291 = vmand %vm289, %vm290
    %292 = vst.msk [vmem:[#allocation10] sm:$0x3] %vm291, %v286
    // Predicated region
    $region18: #{tpu_custom_call.1} parent=1 // pred_check
      _
    $region19: #{tpu_custom_call.1} parent=1 // pred_check_branch
      %294 = sbr.rel (0) target = $region21
    $region20: #{tpu_custom_call.1} parent=1 // pred_region
      %296 = vsyncadd [#allocation4], 0
      %s298 = sshll.u32 [#allocation7], 4
      %s299 = int_to_ptr.vmem [resolvable:$true] %s298
      %s300 = sshll.u32 %s2, 4
      %s301 = int_to_ptr.hbm [resolvable:$true] %s300
      %303 = dma.vmem_to_hbm [thread:$0]  %s299, 64, %s301, [#allocation4]
    $region21: #{tpu_custom_call.1} parent=1 // pred_fallthru
      _
    // Predicated region
    $region22: #{tpu_custom_call.1} parent=1 // pred_check
      _
    $region23: #{tpu_custom_call.1} parent=1 // pred_check_branch
      %305 = sbr.rel (0) target = $region25
    $region24: #{tpu_custom_call.1} parent=1 // pred_region
      %307 = vsyncadd [#allocation9], 0
      %s309 = sshll.u32 [#allocation8], 4
      %s310 = int_to_ptr.vmem [resolvable:$true] %s309
      %s311 = sshll.u32 %s3, 4
      %s312 = int_to_ptr.hbm [resolvable:$true] %s311
      %314 = dma.vmem_to_hbm [thread:$0]  %s310, 64, %s312, [#allocation9]
    $region25: #{tpu_custom_call.1} parent=1 // pred_fallthru
      _
    // Predicated region
    $region26: #{tpu_custom_call.1} parent=1 // pred_check
      _
    $region27: #{tpu_custom_call.1} parent=1 // pred_check_branch
      %316 = sbr.rel (0) target = $region29
    $region28: #{tpu_custom_call.1} parent=1 // pred_region
      %318 = vsyncadd [#allocation9], 0
      %s320 = sshll.u32 [#allocation10], 4
      %s321 = int_to_ptr.vmem [resolvable:$true] %s320
      %s322 = sshll.u32 %s4, 4
      %s323 = int_to_ptr.hbm [resolvable:$true] %s322
      %325 = dma.vmem_to_hbm [thread:$0]  %s321, 32, %s323, [#allocation9]
    $region29: #{tpu_custom_call.1} parent=1 // pred_fallthru
      _
    // Predicated region
    $region30: #{tpu_custom_call.1} parent=1 // pred_check
      _
    $region31: #{tpu_custom_call.1} parent=1 // pred_check_branch
      %327 = sbr.rel (0) target = $region33
    $region32: #{tpu_custom_call.1} parent=1 // pred_region
      %329 = dma.done [#allocation4], 64
    $region33: #{tpu_custom_call.1} parent=1 // pred_fallthru
      _
    // Predicated region
    $region34: #{tpu_custom_call.1} parent=1 // pred_check
      _
    $region35: #{tpu_custom_call.1} parent=1 // pred_check_branch
      %331 = sbr.rel (0) target = $region37
    $region36: #{tpu_custom_call.1} parent=1 // pred_region
      %333 = dma.done [#allocation9], 64
    $region37: #{tpu_custom_call.1} parent=1 // pred_fallthru
      _
    // Predicated region
    $region38: #{tpu_custom_call.1} parent=1 // pred_check
      _
    $region39: #{tpu_custom_call.1} parent=1 // pred_check_branch
      %335 = sbr.rel (0) target = $region41
    $region40: #{tpu_custom_call.1} parent=1 // pred_region
      %337 = dma.done [#allocation9], 32
    $region41: #{tpu_custom_call.1} parent=1 // pred_fallthru
      _
    %338 = vsyncpa [#allocation3], 1
    %339 = vsyncpa [#allocation6], 1
    %340 = vsyncpa [#allocation4], 1
    %341 = vsyncpa [#allocation9], 1

</llo_original>
